<compile_context>
chip_gen: v7x
topology: tpu7x:2x2x1
jax: 0.10.0
libtpu: 0.0.40
codegen_flags: <defaults>
</compile_context>

<pallas_src>
from functools import partial

import jax
import jax.numpy as jnp
from jax.experimental import pallas as pl
from jax.experimental.pallas import tpu as pltpu


def _coattn_kernel(scale, text_ref, img_ref, k_ref, c_ref, out_ref):
    text = text_ref[...]                       # [TB, S, T]  f32
    img = img_ref[...][:, 0, :]                # [TB, I]
    TB, S, T = text.shape

    # Fused score vectors for both attention directions (lane-dense 2T cols):
    #   v[:, :T]  -> image-attention direction (query=text,  key=image)
    #   v[:, T:]  -> text-attention  direction (query=image, key=text)
    v = (jnp.dot(img, k_ref[...], preferred_element_type=jnp.float32)
         + c_ref[...]) * scale                 # [TB, 2T]
    vr = v.reshape(TB, 2, T)                   # [TB, 2, T]

    # Scores over the sequence axis for both directions at once -> [TB, 2, S].
    s = jnp.einsum("bkt,bst->bks", vr, text,
                   preferred_element_type=jnp.float32)

    # Softmax over S (f32), reciprocal on the EUP.
    m = jnp.max(s, axis=-1, keepdims=True)
    e = jnp.exp(s - m)
    denom = jnp.sum(e, axis=-1, keepdims=True)
    a = e * pl.reciprocal(denom, approx=True)  # [TB, 2, S]

    # Attention-weighted sums of the text rows -> [TB, 2, T].
    att = jnp.einsum("bks,bst->bkt", a, text,
                     preferred_element_type=jnp.float32)

    # Single lane-dense store: [TB, 1, 2T] slab (first T cols = image path,
    # last T cols = text path).
    out_ref[...] = att.reshape(TB, 1, 2 * T).astype(out_ref.dtype)


def _batch_tile(B, S, T, itemsize):
    """Pick batch-tile size: fill sublanes/MXU rows, respect a VMEM budget
    (sized for v7x's smaller VMEM), keep >=2 grid steps when B >= 2 so both
    v7x TensorCores get work."""
    tb = min(B, max(1, 256 // max(S, 1)))
    vmem_budget = 8 * 1024 * 1024              # double-buffered text block budget
    tb = max(1, min(tb, vmem_budget // max(1, 2 * S * T * itemsize)))
    if B >= 2:
        tb = min(tb, (B + 1) // 2)
    while B % tb:
        tb -= 1
    return tb


def co_attention(text_features, image_features, params):
    """text_features: [B, S, T], image_features: [B, I]
    -> (attended_text [B, T], attended_image [B, T])"""
    B, S, T = text_features.shape
    I = image_features.shape[-1]
    H = params["w_t2i"].shape[1]
    scale = float(H) ** (-0.5)
    dtype = text_features.dtype

    # --- weight folding (tiny, done once per call outside the kernel) -------
    # image-attn scores:  s1 ~ text . (W_t2i @ (img @ W_i2t + b_i2t))
    # text-attn  scores:  s2 ~ text . (W_t2ik @ (img @ W_i2tq + b_i2tq))
    # (b_t2i / b_t2ik are constant over the sequence axis -> cancel in softmax)
    k_img = params["w_i2t"] @ params["w_t2i"].T        # [I, T]
    k_txt = params["w_i2tq"] @ params["w_t2ik"].T      # [I, T]
    c_img = params["b_i2t"] @ params["w_t2i"].T        # [1, T]
    c_txt = params["b_i2tq"] @ params["w_t2ik"].T      # [1, T]
    k_fused = jnp.concatenate([k_img, k_txt], axis=1).astype(jnp.float32)  # [I, 2T]
    c_fused = jnp.concatenate([c_img, c_txt], axis=1).astype(jnp.float32)  # [1, 2T]

    img3 = image_features.reshape(B, 1, I)

    TB = _batch_tile(B, S, T, jnp.dtype(dtype).itemsize)
    grid = (B // TB,)

    out = pl.pallas_call(
        partial(_coattn_kernel, scale),
        grid=grid,
        in_specs=[
            pl.BlockSpec((TB, S, T), lambda b: (b, 0, 0)),      # text tile
            pl.BlockSpec((TB, 1, I), lambda b: (b, 0, 0)),      # image tile
            pl.BlockSpec((I, 2 * T), lambda b: (0, 0)),         # fused weights (grid-invariant)
            pl.BlockSpec((1, 2 * T), lambda b: (0, 0)),         # fused bias
        ],
        out_specs=pl.BlockSpec((TB, 1, 2 * T), lambda b: (b, 0, 0)),
        out_shape=jax.ShapeDtypeStruct((B, 1, 2 * T), dtype),
        compiler_params=pltpu.CompilerParams(
            dimension_semantics=("parallel",)),
    )(text_features, img3, k_fused, c_fused)

    out = out[:, 0, :]                     # [B, 2T]
    attended_image = out[:, :T]
    attended_text = out[:, T:]
    return attended_text, attended_image


def _reference(text, img, params, hidden_dim):
    """Pure-JAX reference mirroring the PyTorch forward exactly."""
    scale = float(hidden_dim) ** (-0.5)
    tq = text @ params["w_t2i"] + params["b_t2i"][0]          # [B, S, H]
    ik = img @ params["w_i2t"] + params["b_i2t"][0]           # [B, H]
    s1 = jnp.einsum("bsh,bh->bs", tq, ik) * scale             # [B, S]
    a1 = jax.nn.softmax(s1, axis=1)
    attended_image = jnp.einsum("bs,bst->bt", a1, text)       # [B, T]
    iq = img @ params["w_i2tq"] + params["b_i2tq"][0]         # [B, H]
    tk = text @ params["w_t2ik"] + params["b_t2ik"][0]        # [B, S, H]
    s2 = jnp.einsum("bh,bsh->bs", iq, tk) * scale             # [B, S]
    a2 = jax.nn.softmax(s2, axis=1)
    attended_text = jnp.einsum("bs,bst->bt", a2, text)        # [B, T]
    return attended_text, attended_image


def _init_params(key, text_dim, image_dim, hidden_dim):
    """Deterministic nn.Linear-style init, weights stored as [in_dim, out_dim]."""
    ks = jax.random.split(key, 8)

    def lin(kw, kb, fan_in, fan_out):
        bound = 1.0 / (fan_in ** 0.5)
        w = jax.random.uniform(kw, (fan_in, fan_out), jnp.float32, -bound, bound)
        b = jax.random.uniform(kb, (1, fan_out), jnp.float32, -bound, bound)
        return w, b

    w_t2i, b_t2i = lin(ks[0], ks[1], text_dim, hidden_dim)
    w_i2t, b_i2t = lin(ks[2], ks[3], image_dim, hidden_dim)
    w_i2tq, b_i2tq = lin(ks[4], ks[5], image_dim, hidden_dim)
    w_t2ik, b_t2ik = lin(ks[6], ks[7], text_dim, hidden_dim)
    return dict(w_t2i=w_t2i, b_t2i=b_t2i, w_i2t=w_i2t, b_i2t=b_i2t,
                w_i2tq=w_i2tq, b_i2tq=b_i2tq, w_t2ik=w_t2ik, b_t2ik=b_t2ik)


if __name__ == "__main__":
    # Small shapes consistent with the module's forward signature.
    B, S = 2, 8
    TEXT_DIM, IMAGE_DIM, HIDDEN_DIM = 64, 32, 64

    key = jax.random.PRNGKey(0)
    k_text, k_img, k_params = jax.random.split(key, 3)

    text_features = jax.random.normal(k_text, (B, S, TEXT_DIM), jnp.float32)
    image_features = jax.random.normal(k_img, (B, IMAGE_DIM), jnp.float32)
    params = _init_params(k_params, TEXT_DIM, IMAGE_DIM, HIDDEN_DIM)

    coattn = jax.jit(co_attention)
    attended_text, attended_image = coattn(text_features, image_features, params)
    jax.block_until_ready((attended_text, attended_image))

    ref_text, ref_image = _reference(text_features, image_features, params, HIDDEN_DIM)
    assert attended_text.shape == (B, TEXT_DIM)
    assert attended_image.shape == (B, TEXT_DIM)
    # Tolerance accounts for the approximate EUP reciprocal in the softmax
    # normalization and the algebraically reassociated (but equivalent) scores.
    assert jnp.allclose(attended_text, ref_text, atol=5e-3, rtol=5e-3)
    assert jnp.allclose(attended_image, ref_image, atol=5e-3, rtol=5e-3)

    print("KERNEL_OK")
</pallas_src>

<mosaic_0001>
module attributes {stable_mosaic.version = 11 : i64} {
  func.func @_coattn_kernel(%arg0: i32, %arg1: memref<1x8x64xf32, #tpu.memory_space<vmem>>, %arg2: memref<1x1x32xf32, #tpu.memory_space<vmem>>, %arg3: memref<32x128xf32, #tpu.memory_space<vmem>>, %arg4: memref<1x128xf32, #tpu.memory_space<vmem>>, %arg5: memref<1x1x128xf32, #tpu.memory_space<vmem>>) attributes {dimension_semantics = [#tpu.dimension_semantics<parallel>], iteration_bounds = array<i64: 2>, scalar_prefetch = 0 : i64, scratch_operands = 0 : i64, tpu.core_type = #tpu.core_type<tc>, window_params = [{transform_indices = @transform_0, window_bounds = array<i64: 1, 8, 64>}, {transform_indices = @transform_1, window_bounds = array<i64: 1, 1, 32>}, {pipeline_mode = #tpu.pipeline_mode<synchronous>, transform_indices = @transform_2, window_bounds = array<i64: 32, 128>}, {pipeline_mode = #tpu.pipeline_mode<synchronous>, transform_indices = @transform_3, window_bounds = array<i64: 1, 128>}, {transform_indices = @transform_4, window_bounds = array<i64: 1, 1, 128>}]} {
    %c0 = arith.constant 0 : index
    %c0_0 = arith.constant 0 : index
    %c0_1 = arith.constant 0 : index
    %0 = vector.load %arg1[%c0, %c0_0, %c0_1] : memref<1x8x64xf32, #tpu.memory_space<vmem>>, vector<1x8x64xf32>
    %c0_2 = arith.constant 0 : index
    %c0_3 = arith.constant 0 : index
    %c0_4 = arith.constant 0 : index
    %1 = vector.load %arg2[%c0_2, %c0_3, %c0_4] : memref<1x1x32xf32, #tpu.memory_space<vmem>>, vector<1x1x32xf32>
    %2 = vector.shape_cast %1 : vector<1x1x32xf32> to vector<1x32xf32>
    %c0_5 = arith.constant 0 : index
    %c0_6 = arith.constant 0 : index
    %3 = vector.load %arg3[%c0_5, %c0_6] : memref<32x128xf32, #tpu.memory_space<vmem>>, vector<32x128xf32>
    %cst = arith.constant dense<0.000000e+00> : vector<1x128xf32>
    %4 = tpu.matmul %2, %3, %cst {dimension_numbers = #tpu.dot_dimension_numbers<[1], [0], [0], [1], [0, 0, 1, 1], [], []>} : vector<1x32xf32>, vector<32x128xf32>, vector<1x128xf32> -> vector<1x128xf32>
    %c0_7 = arith.constant 0 : index
    %c0_8 = arith.constant 0 : index
    %5 = vector.load %arg4[%c0_7, %c0_8] : memref<1x128xf32, #tpu.memory_space<vmem>>, vector<1x128xf32>
    %6 = arith.addf %4, %5 : vector<1x128xf32>
    %cst_9 = arith.constant 1.250000e-01 : f32
    %7 = vector.broadcast %cst_9 : f32 to vector<1x128xf32>
    %8 = arith.mulf %6, %7 : vector<1x128xf32>
    %9 = vector.shape_cast %8 : vector<1x128xf32> to vector<1x2x64xf32>
    "tpu.trace_start"() <{level = 10 : i32, message = "bkt,bst->bks"}> : () -> ()
    %cst_10 = arith.constant dense<0.000000e+00> : vector<1x2x8xf32>
    %10 = tpu.matmul %9, %0, %cst_10 {dimension_numbers = #tpu.dot_dimension_numbers<[2], [2], [1], [1], [0, 0, 0, 1, 1, 1], [0], [0]>} : vector<1x2x64xf32>, vector<1x8x64xf32>, vector<1x2x8xf32> -> vector<1x2x8xf32>
    "tpu.trace_stop"() : () -> ()
    %cst_11 = arith.constant dense<0xFF800000> : vector<1x2xf32>
    %11 = vector.multi_reduction <maximumf>, %10, %cst_11 [2] : vector<1x2x8xf32> to vector<1x2xf32>
    %12 = vector.shape_cast %11 : vector<1x2xf32> to vector<1x2x1xf32>
    %13 = vector.broadcast %12 : vector<1x2x1xf32> to vector<1x2x8xf32>
    %14 = arith.subf %10, %13 : vector<1x2x8xf32>
    %15 = math.exp %14 : vector<1x2x8xf32>
    %cst_12 = arith.constant dense<0.000000e+00> : vector<1x2xf32>
    %16 = vector.multi_reduction <add>, %15, %cst_12 [2] : vector<1x2x8xf32> to vector<1x2xf32>
    %17 = vector.shape_cast %16 : vector<1x2xf32> to vector<1x2x1xf32>
    %18 = tpu.reciprocal %17 {approx = true} : vector<1x2x1xf32> -> vector<1x2x1xf32>
    %19 = vector.broadcast %18 : vector<1x2x1xf32> to vector<1x2x8xf32>
    %20 = arith.mulf %15, %19 : vector<1x2x8xf32>
    "tpu.trace_start"() <{level = 10 : i32, message = "bks,bst->bkt"}> : () -> ()
    %cst_13 = arith.constant dense<0.000000e+00> : vector<1x2x64xf32>
    %21 = tpu.matmul %20, %0, %cst_13 {dimension_numbers = #tpu.dot_dimension_numbers<[2], [1], [1], [2], [0, 0, 0, 1, 1, 2], [0], [0]>} : vector<1x2x8xf32>, vector<1x8x64xf32>, vector<1x2x64xf32> -> vector<1x2x64xf32>
    "tpu.trace_stop"() : () -> ()
    %22 = vector.shape_cast %21 : vector<1x2x64xf32> to vector<1x1x128xf32>
    %c0_14 = arith.constant 0 : index
    %c0_15 = arith.constant 0 : index
    %c0_16 = arith.constant 0 : index
    %23 = vector.load %arg5[%c0_14, %c0_15, %c0_16] : memref<1x1x128xf32, #tpu.memory_space<vmem>>, vector<1x1x128xf32>
    tpu.vector_store %arg5[%c0_14, %c0_15, %c0_16], %22 {strides = array<i32>} : memref<1x1x128xf32, #tpu.memory_space<vmem>>, vector<1x1x128xf32>,
    return
  }
  func.func @transform_0(%arg0: i32) -> (i32, i32, i32) {
    %c0_i32 = arith.constant 0 : i32
    %c0_i32_0 = arith.constant 0 : i32
    %c0_i32_1 = arith.constant 0 : i32
    return %arg0, %c0_i32, %c0_i32_0 : i32, i32, i32
  }
  func.func @transform_1(%arg0: i32) -> (i32, i32, i32) {
    %c0_i32 = arith.constant 0 : i32
    %c0_i32_0 = arith.constant 0 : i32
    %c0_i32_1 = arith.constant 0 : i32
    return %arg0, %c0_i32, %c0_i32_0 : i32, i32, i32
  }
  func.func @transform_2(%arg0: i32) -> (i32, i32) {
    %c0_i32 = arith.constant 0 : i32
    %c0_i32_0 = arith.constant 0 : i32
    %c0_i32_1 = arith.constant 0 : i32
    return %c0_i32, %c0_i32_0 : i32, i32
  }
  func.func @transform_3(%arg0: i32) -> (i32, i32) {
    %c0_i32 = arith.constant 0 : i32
    %c0_i32_0 = arith.constant 0 : i32
    %c0_i32_1 = arith.constant 0 : i32
    return %c0_i32, %c0_i32_0 : i32, i32
  }
  func.func @transform_4(%arg0: i32) -> (i32, i32, i32) {
    %c0_i32 = arith.constant 0 : i32
    %c0_i32_0 = arith.constant 0 : i32
    %c0_i32_1 = arith.constant 0 : i32
    return %arg0, %c0_i32, %c0_i32_0 : i32, i32, i32
  }
}

</mosaic_0001>

<llo_original>
// kernel: co_attention.1
$region0: #{co_attention.1}
  #allocation0 [shape = 'u32[]', space=smem, size = 0x4, offset = 0x4, fixed_abs, tag = 'smem constant byte address 0x4 - core index']
  #allocation1 [shape = 'u32[144,128]{1,0:T(1,128)}', space=vmem, size = 0x12000, scoped, tag = 'internal scratch']
  %s0 = inlined_call_operand.vmem [shape: f32[2,8,64], index: 0, kind: input, shape index: {}]
  %s1 = inlined_call_operand.vmem [shape: f32[2,1,32], index: 1, kind: input, shape index: {}]
  %s2 = inlined_call_operand.vmem [shape: f32[32,128], index: 2, kind: input, shape index: {}]
  %s3 = inlined_call_operand.vmem [shape: f32[1,128], index: 3, kind: input, shape index: {}]
  %s4 = inlined_call_operand.vmem [shape: f32[2,1,128], index: 4, kind: output, shape index: {}]
  %s5 = sld [smem:[#allocation0]]
  $region49: #{co_attention.1} parent=0
    _
  %s7 = ssub.s32 1, %s5
  %s8 = scalar_select 0, %s7, %s5
  loop: start=0, step=1, limit=4
  $region2: #{co_attention.1} parent=0 // loop_pre_header
    _
  $region3: #{co_attention.1} parent=0 // loop_header
    %s10 = sphi 0, %s14
    %p11 = scmp.ge.s32.totalorder %s10, 4
    %s20 = sphi 0, %s22
    %s23 = sphi 0, %s20
    %s24 = sphi 0, %s23
    %s40 = sphi 0, %s24
    %s46 = sphi 0, %s48
    %s49 = sphi 0, %s46
    %s50 = sphi 0, %s49
    %s66 = sphi 0, %s50
    %s70 = sphi 0, %s70
    %s72 = sphi 0, %s70
    %s73 = sphi 0, %s72
    %s87 = sphi 0, %s73
    %s91 = sphi 0, %s91
    %s93 = sphi 0, %s91
    %s94 = sphi 0, %s93
    %s108 = sphi 0, %s94
    %s114 = sphi 0, %s116
    %s117 = sphi 0, %s114
    %s118 = sphi 0, %s117
    %s134 = sphi 0, %s118
  $region4: #{co_attention.1} parent=0 // loop_header_branch
    %13 = sbr.rel (%p11) target = $region8
  $region5: #{co_attention.1} parent=0 // loop_body
    %s15 = ssub.s32 %s10, 1
    %s16 = ssub.s32 %s10, 2
    %s17 = sadd.s32 %s10, 1
    %s18 = ssub.s32 %s10, %s17
    %p19 = scmp.eq.s32.totalorder %s18, 0
    %s21 = sadd.s32 %s20, 1
    %s22 = scalar_select %p19, %s20, %s21
    %p25 = pneg %p19
    %p26 = scmp.eq.s32.totalorder %s10, 1
    %p27 = por %p25, %p26
    %p28 = scmp.ne.s32.totalorder %s20, %s23
    %p29 = scmp.eq.s32.totalorder %s10, 0
    %p30 = por %p28, %p29
    %p31 = scmp.ne.s32.totalorder %s20, %s23
    %p32 = scmp.eq.s32.totalorder %s15, 1
    %p33 = por %p31, %p32
    %p34 = scmp.ne.s32.totalorder %s23, %s24
    %p35 = scmp.eq.s32.totalorder %s15, 0
    %p36 = por %p34, %p35
    %p37 = scmp.ne.s32.totalorder %s23, %s24
    %p38 = scmp.eq.s32.totalorder %s16, 1
    %p39 = por %p37, %p38
    %p41 = scmp.ne.s32.totalorder %s24, %s40
    %p42 = scmp.eq.s32.totalorder %s16, 0
    %p43 = por %p41, %p42
    %s44 = ssub.s32 %s10, %s17
    %p45 = scmp.eq.s32.totalorder %s44, 0
    %s47 = sadd.s32 %s46, 1
    %s48 = scalar_select %p45, %s46, %s47
    %p51 = pneg %p45
    %p52 = scmp.eq.s32.totalorder %s10, 1
    %p53 = por %p51, %p52
    %p54 = scmp.ne.s32.totalorder %s46, %s49
    %p55 = scmp.eq.s32.totalorder %s10, 0
    %p56 = por %p54, %p55
    %p57 = scmp.ne.s32.totalorder %s46, %s49
    %p58 = scmp.eq.s32.totalorder %s15, 1
    %p59 = por %p57, %p58
    %p60 = scmp.ne.s32.totalorder %s49, %s50
    %p61 = scmp.eq.s32.totalorder %s15, 0
    %p62 = por %p60, %p61
    %p63 = scmp.ne.s32.totalorder %s49, %s50
    %p64 = scmp.eq.s32.totalorder %s16, 1
    %p65 = por %p63, %p64
    %p67 = scmp.ne.s32.totalorder %s50, %s66
    %p68 = scmp.eq.s32.totalorder %s16, 0
    %p69 = por %p67, %p68
    %s71 = sadd.s32 %s70, 1
    %p74 = scmp.eq.s32.totalorder %s10, 1
    %p75 = scmp.ne.s32.totalorder %s70, %s72
    %p76 = scmp.eq.s32.totalorder %s10, 0
    %p77 = por %p75, %p76
    %p78 = scmp.ne.s32.totalorder %s70, %s72
    %p79 = scmp.eq.s32.totalorder %s15, 1
    %p80 = por %p78, %p79
    %p81 = scmp.ne.s32.totalorder %s72, %s73
    %p82 = scmp.eq.s32.totalorder %s15, 0
    %p83 = por %p81, %p82
    %p84 = scmp.ne.s32.totalorder %s72, %s73
    %p85 = scmp.eq.s32.totalorder %s16, 1
    %p86 = por %p84, %p85
    %p88 = scmp.ne.s32.totalorder %s73, %s87
    %p89 = scmp.eq.s32.totalorder %s16, 0
    %p90 = por %p88, %p89
    %s92 = sadd.s32 %s91, 1
    %p95 = scmp.eq.s32.totalorder %s10, 1
    %p96 = scmp.ne.s32.totalorder %s91, %s93
    %p97 = scmp.eq.s32.totalorder %s10, 0
    %p98 = por %p96, %p97
    %p99 = scmp.ne.s32.totalorder %s91, %s93
    %p100 = scmp.eq.s32.totalorder %s15, 1
    %p101 = por %p99, %p100
    %p102 = scmp.ne.s32.totalorder %s93, %s94
    %p103 = scmp.eq.s32.totalorder %s15, 0
    %p104 = por %p102, %p103
    %p105 = scmp.ne.s32.totalorder %s93, %s94
    %p106 = scmp.eq.s32.totalorder %s16, 1
    %p107 = por %p105, %p106
    %p109 = scmp.ne.s32.totalorder %s94, %s108
    %p110 = scmp.eq.s32.totalorder %s16, 0
    %p111 = por %p109, %p110
    %s112 = ssub.s32 %s10, %s17
    %p113 = scmp.eq.s32.totalorder %s112, 0
    %s115 = sadd.s32 %s114, 1
    %s116 = scalar_select %p113, %s114, %s115
    %p119 = pneg %p113
    %p120 = scmp.eq.s32.totalorder %s10, 1
    %p121 = por %p119, %p120
    %p122 = scmp.ne.s32.totalorder %s114, %s117
    %p123 = scmp.eq.s32.totalorder %s10, 0
    %p124 = por %p122, %p123
    %p125 = scmp.ne.s32.totalorder %s114, %s117
    %p126 = scmp.eq.s32.totalorder %s15, 1
    %p127 = por %p125, %p126
    %p128 = scmp.ne.s32.totalorder %s117, %s118
    %p129 = scmp.eq.s32.totalorder %s15, 0
    %p130 = por %p128, %p129
    %p131 = scmp.ne.s32.totalorder %s117, %s118
    %p132 = scmp.eq.s32.totalorder %s16, 1
    %p133 = por %p131, %p132
    %p135 = scmp.ne.s32.totalorder %s118, %s134
    %p136 = scmp.eq.s32.totalorder %s16, 0
    %p137 = por %p135, %p136
    %p138 = scmp.le.s32.totalorder 1, %s10
    %p139 = scmp.lt.s32.totalorder %s10, 3
    %p140 = pnand %p138, %p139
    %p141 = pneg %p140
    // Predicated region
    $region9: #{co_attention.1} parent=5 // pred_check
      _
    $region10: #{co_attention.1} parent=5 // pred_check_branch
      %143 = sbr.rel (%p140) target = $region12
    $region11: #{co_attention.1} parent=5 // pred_region
      %s144 = ssub.s32 %s10, 1
      // Predicated region
      $region13: #{co_attention.1} parent=11 // pred_check
        %p145 = pneg %p83
      $region14: #{co_attention.1} parent=11 // pred_check_branch
        %147 = sbr.rel (%p145) target = $region16
      $region15: #{co_attention.1} parent=11 // pred_region
        _
      $region16: #{co_attention.1} parent=11 // pred_fallthru
        _
      // Predicated region
      $region17: #{co_attention.1} parent=11 // pred_check
        %p148 = pneg %p104
      $region18: #{co_attention.1} parent=11 // pred_check_branch
        %150 = sbr.rel (%p148) target = $region20
      $region19: #{co_attention.1} parent=11 // pred_region
        _
      $region20: #{co_attention.1} parent=11 // pred_fallthru
        _
    $region12: #{co_attention.1} parent=5 // pred_fallthru
      _
    %p151 = scmp.lt.s32.totalorder %s10, 2
    // Predicated region
    $region21: #{co_attention.1} parent=5 // pred_check
      %p152 = pneg %p151
    $region22: #{co_attention.1} parent=5 // pred_check_branch
      %154 = sbr.rel (%p152) target = $region24
    $region23: #{co_attention.1} parent=5 // pred_region
      // Predicated region
      $region25: #{co_attention.1} parent=23 // pred_check
        %p155 = pneg %p30
      $region26: #{co_attention.1} parent=23 // pred_check_branch
        %157 = sbr.rel (%p155) target = $region28
      $region27: #{co_attention.1} parent=23 // pred_region
        %p158 = scmp.lt.s32.totalorder %s10, 1
        %s159 = scalar_select %p158, %s10, 1
        %s160 = smul.addr %s159, 8
        %s161 = scalar_lea.vmem %s0, %s160
      $region28: #{co_attention.1} parent=23 // pred_fallthru
        _
      // Predicated region
      $region29: #{co_attention.1} parent=23 // pred_check
        %p162 = pneg %p56
      $region30: #{co_attention.1} parent=23 // pred_check_branch
        %164 = sbr.rel (%p162) target = $region32
      $region31: #{co_attention.1} parent=23 // pred_region
        %p165 = scmp.lt.s32.totalorder %s10, 1
        %s166 = scalar_select %p165, %s10, 1
        %s167 = scalar_lea.vmem %s1, %s166
      $region32: #{co_attention.1} parent=23 // pred_fallthru
        _
    $region24: #{co_attention.1} parent=5 // pred_fallthru
      _
    %p168 = scmp.le.s32.totalorder 1, %s10
    %p169 = scmp.lt.s32.totalorder %s10, 3
    %p170 = pnand %p168, %p169
    %p171 = pneg %p170
    // Predicated region
    $region33: #{co_attention.1} parent=5 // pred_check
      _
    $region34: #{co_attention.1} parent=5 // pred_check_branch
      %173 = sbr.rel (%p170) target = $region36
    $region35: #{co_attention.1} parent=5 // pred_region
      %s174 = ssub.s32 %s10, 1
      %p175 = scmp.lt.s32.totalorder %s15, 1
      %s176 = scalar_select %p175, %s15, 1
      %s177 = smul.addr %s176, 8
      %s178 = scalar_lea.vmem %s0, %s177
      %p179 = pneg %p36
      %p180 = pneg %p33
      %p181 = scmp.lt.s32.totalorder %s15, 1
      %s182 = scalar_select %p181, %s15, 1
      %s183 = scalar_lea.vmem %s1, %s182
      %p184 = pneg %p62
      %p185 = pneg %p59
      %p186 = pneg %p83
      %p187 = pneg %p80
      %p188 = pneg %p104
      %p189 = pneg %p101
      %p190 = pneg %p130
      %p191 = pneg %p127
      %p192 = scmp.lt.s32.totalorder %s15, 1
      %s193 = scalar_select %p192, %s15, 1
      %s194 = scalar_lea.vmem %s4, %s193
      %p195 = scmp.lt.s32.totalorder %s15, 1
      %s196 = scalar_select %p195, %s15, 1
      %s197 = smul.addr %s196, 8
      %s198 = scalar_lea.vmem %s0, %s197
      %p199 = scmp.lt.s32.totalorder %s15, 1
      %s200 = scalar_select %p199, %s15, 1
      %s201 = scalar_lea.vmem %s1, %s200
      %p202 = scmp.lt.s32.totalorder %s15, 1
      %s203 = scalar_select %p202, %s15, 1
      %s204 = scalar_lea.vmem %s4, %s203
      %v205 = vld [vmem:[%s198] sm:$0xff]
      %v206 = vld [vmem:[%s201] sm:$0x1]
      %v207 = vld [vmem:[%s2] sm:$0xff]
      %v208 = vld [vmem:[%s2 + $0x8] sm:$0xff]
      %v209 = vld [vmem:[%s2 + $0x10] sm:$0xff]
      %v210 = vld [vmem:[%s2 + $0x18] sm:$0xff]
      %v211 = vld [vmem:[%s3] sm:$0x1]
      %vm212 = vcmask 261120
      %v214 = vsel %vm212, %v206, 0
      %216 = vmatprep.subr.mxu0 0.0
      %217 = vmatpush1.msra.mxu0 %v207
      %218 = vmatprep.subr.mxu0 0.0
      %219 = vmatpush1.msra.mxu0 %v208
      %220 = vmatprep.subr.mxu0 0.0
      %221 = vmatpush1.msra.mxu0 %v209
      %222 = vmatprep.subr.mxu0 0.0
      %223 = vmatpush1.msra.mxu0 %v210
      %224 = vmatprep.subr.mxu0 0.0
      %225 = vmatpush1.msra.mxu0 0.0
      %226 = vmatprep.subr.mxu0 0.0
      %227 = vmatpush1.msra.mxu0 0.0
      %228 = vmatprep.subr.mxu0 0.0
      %229 = vmatpush1.msra.mxu0 0.0
      %230 = vmatprep.subr.mxu0 0.0
      %231 = vmatpush1.msra.mxu0 0.0
      %232 = vmatprep.subr.mxu0 0.0
      %233 = vmatpush1.msra.mxu0 0.0
      %234 = vmatprep.subr.mxu0 0.0
      %235 = vmatpush1.msra.mxu0 0.0
      %236 = vmatprep.subr.mxu0 0.0
      %237 = vmatpush1.msra.mxu0 0.0
      %238 = vmatprep.subr.mxu0 0.0
      %239 = vmatpush1.msra.mxu0 0.0
      %240 = vmatprep.subr.mxu0 0.0
      %241 = vmatpush1.msra.mxu0 0.0
      %242 = vmatprep.subr.mxu0 0.0
      %243 = vmatpush1.msra.mxu0 0.0
      %244 = vmatprep.subr.mxu0 0.0
      %245 = vmatpush1.msra.mxu0 0.0
      %246 = vmatprep.subr.mxu0 0.0
      %247 = vmatpush1.msra.mxu0 0.0
      %248 = vmatprep.subr.mxu0 0.0
      %249 = vmatpush1.msra.mxu0 0.0
      %250 = vmatprep.subr.mxu0 0.0
      %251 = vmatpush1.msra.mxu0 0.0
      %252 = vmatprep.subr.mxu0 0.0
      %253 = vmatpush1.msra.mxu0 0.0
      %254 = vmatprep.subr.mxu0 0.0
      %255 = vmatpush1.msra.mxu0 0.0
      %256 = vmatprep.subr.mxu0 0.0
      %257 = vmatpush1.msra.mxu0 0.0
      %258 = vmatprep.subr.mxu0 0.0
      %259 = vmatpush1.msra.mxu0 0.0
      %260 = vmatprep.subr.mxu0 0.0
      %261 = vmatpush1.msra.mxu0 0.0
      %262 = vmatprep.subr.mxu0 0.0
      %263 = vmatpush1.msra.mxu0 0.0
      %264 = vmatprep.subr.mxu0 0.0
      %265 = vmatpush1.msra.mxu0 0.0
      %266 = vmatprep.subr.mxu0 0.0
      %267 = vmatpush1.msra.mxu0 0.0
      %268 = vmatprep.subr.mxu0 0.0
      %269 = vmatpush1.msra.mxu0 0.0
      %270 = vmatprep.subr.mxu0 0.0
      %271 = vmatpush1.msra.mxu0 0.0
      %272 = vmatprep.subr.mxu0 0.0
      %273 = vmatpush1.msra.mxu0 0.0
      %274 = vmatprep.subr.mxu0 0.0
      %275 = vmatpush1.msra.mxu0 0.0
      %276 = vmatprep.subr.mxu0 0.0
      %277 = vmatpush1.msra.mxu0 0.0
      %278 = vmatprep.subr.mxu0 0.0
      %279 = vmatpush1.msra.mxu0 0.0
      %280 = vmatprep.mubr.f32.mxu0 0.0
      %281 = vmatmul.mubr.f32.gmra.mrb[0].mxu0 %v214
      %v282 = vpop.f32.mrb[0].mxu0
      %v283 = vadd.f32 %v211, %v282
      %v284 = vpop.f32.mrb[0].mxu0
      %285 = vdwg.mxu0
      %v286 = vmul.f32 %v283, 0.125
      %288 = vrot.lane.b32.xlu0 %v286, 64
      %v289 = vpop.permute.xlu0 %288
      %v291 = vcombine.low %v286, %v289
      %v293 = vunpack.c.l.s4 1934713408
      %v294 = vunpack.c.0.s8 %v293
      %v295 = vlaneseq
      %v296 = vshrl.u32 %v295, 7
      %v297 = vsub.s32 %v294, %v296
      %v298 = vrot.slane %v291, %v297
      %vm299 = vcmask 523264
      %v301 = vsel %vm299, %v298, 0
      %v304 = vsel %vm299, %v205, 0
      %306 = vmatprep.subr.mxu0 0.0
      %307 = vmatpush1.xpose.msra.mxu0 %v304
      %308 = vmatprep.subr.mxu0 0.0
      %309 = vmatpush1.xpose.msra.mxu0 0.0
      %310 = vmatprep.subr.mxu0 0.0
      %311 = vmatpush1.xpose.msra.mxu0 0.0
      %312 = vmatprep.subr.mxu0 0.0
      %313 = vmatpush1.xpose.msra.mxu0 0.0
      %314 = vmatprep.subr.mxu0 0.0
      %315 = vmatpush1.xpose.msra.mxu0 0.0
      %316 = vmatprep.subr.mxu0 0.0
      %317 = vmatpush1.xpose.msra.mxu0 0.0
      %318 = vmatprep.subr.mxu0 0.0
      %319 = vmatpush1.xpose.msra.mxu0 0.0
      %320 = vmatprep.subr.mxu0 0.0
      %321 = vmatpush1.xpose.msra.mxu0 0.0
      %322 = vmatprep.subr.mxu0 0.0
      %323 = vmatpush1.xpose.msra.mxu0 0.0
      %324 = vmatprep.subr.mxu0 0.0
      %325 = vmatpush1.xpose.msra.mxu0 0.0
      %326 = vmatprep.subr.mxu0 0.0
      %327 = vmatpush1.xpose.msra.mxu0 0.0
      %328 = vmatprep.subr.mxu0 0.0
      %329 = vmatpush1.xpose.msra.mxu0 0.0
      %330 = vmatprep.subr.mxu0 0.0
      %331 = vmatpush1.xpose.msra.mxu0 0.0
      %332 = vmatprep.subr.mxu0 0.0
      %333 = vmatpush1.xpose.msra.mxu0 0.0
      %334 = vmatprep.subr.mxu0 0.0
      %335 = vmatpush1.xpose.msra.mxu0 0.0
      %336 = vmatprep.subr.mxu0 0.0
      %337 = vmatpush1.xpose.msra.mxu0 0.0
      %338 = vmatprep.subr.mxu0 0.0
      %339 = vmatpush1.xpose.msra.mxu0 0.0
      %340 = vmatprep.subr.mxu0 0.0
      %341 = vmatpush1.xpose.msra.mxu0 0.0
      %342 = vmatprep.subr.mxu0 0.0
      %343 = vmatpush1.xpose.msra.mxu0 0.0
      %344 = vmatprep.subr.mxu0 0.0
      %345 = vmatpush1.xpose.msra.mxu0 0.0
      %346 = vmatprep.subr.mxu0 0.0
      %347 = vmatpush1.xpose.msra.mxu0 0.0
      %348 = vmatprep.subr.mxu0 0.0
      %349 = vmatpush1.xpose.msra.mxu0 0.0
      %350 = vmatprep.subr.mxu0 0.0
      %351 = vmatpush1.xpose.msra.mxu0 0.0
      %352 = vmatprep.subr.mxu0 0.0
      %353 = vmatpush1.xpose.msra.mxu0 0.0
      %354 = vmatprep.subr.mxu0 0.0
      %355 = vmatpush1.xpose.msra.mxu0 0.0
      %356 = vmatprep.subr.mxu0 0.0
      %357 = vmatpush1.xpose.msra.mxu0 0.0
      %358 = vmatprep.subr.mxu0 0.0
      %359 = vmatpush1.xpose.msra.mxu0 0.0
      %360 = vmatprep.subr.mxu0 0.0
      %361 = vmatpush1.xpose.msra.mxu0 0.0
      %362 = vmatprep.subr.mxu0 0.0
      %363 = vmatpush1.xpose.msra.mxu0 0.0
      %364 = vmatprep.subr.mxu0 0.0
      %365 = vmatpush1.xpose.msra.mxu0 0.0
      %366 = vmatprep.subr.mxu0 0.0
      %367 = vmatpush1.xpose.msra.mxu0 0.0
      %368 = vmatprep.subr.mxu0 0.0
      %369 = vmatpush1.xpose.msra.mxu0 0.0
      %370 = vmatprep.mubr.f32.mxu0 0.0
      %371 = vmatmul.mubr.f32.gmra.mrb[0].mxu0 %v301
      %v372 = vpop.f32.mrb[0].mxu0
      %v373 = vadd.f32 0.0, %v372
      %v374 = vpop.f32.mrb[0].mxu0
      %375 = vdwg.mxu0
      %vm376 = vcmask 58368
      %v377 = vsel %vm376, %v373, -inf
      %378 = vmax.xlane.f32.xlu0 %v377
      %v379 = vpop.xlane.xlu0 %378
      %v380 = vsub.f32 %v373, %v379
      %v381 = vmul.f32 %v380, 1.442695
      %v382 = vpow.pop %v381
      %v383 = vsel %vm376, %v382, 0.0
      %384 = vadd.xlane.f32.xlu0 %v383
      %v385 = vpop.xlane.xlu0 %384
      %v386 = vrcp.pop %v385
      %v387 = vmul.f32 %v382, %v386
      %vm388 = vcmask 64512
      %v390 = vsel %vm388, %v387, 0
      %392 = vmatprep.subr.mxu0 0.0
      %393 = vmatpush1.msra.mxu0 %v205
      %394 = vmatprep.subr.mxu0 0.0
      %395 = vmatpush1.msra.mxu0 0.0
      %396 = vmatprep.subr.mxu0 0.0
      %397 = vmatpush1.msra.mxu0 0.0
      %398 = vmatprep.subr.mxu0 0.0
      %399 = vmatpush1.msra.mxu0 0.0
      %400 = vmatprep.subr.mxu0 0.0
      %401 = vmatpush1.msra.mxu0 0.0
      %402 = vmatprep.subr.mxu0 0.0
      %403 = vmatpush1.msra.mxu0 0.0
      %404 = vmatprep.subr.mxu0 0.0
      %405 = vmatpush1.msra.mxu0 0.0
      %406 = vmatprep.subr.mxu0 0.0
      %407 = vmatpush1.msra.mxu0 0.0
      %408 = vmatprep.subr.mxu0 0.0
      %409 = vmatpush1.msra.mxu0 0.0
      %410 = vmatprep.subr.mxu0 0.0
      %411 = vmatpush1.msra.mxu0 0.0
      %412 = vmatprep.subr.mxu0 0.0
      %413 = vmatpush1.msra.mxu0 0.0
      %414 = vmatprep.subr.mxu0 0.0
      %415 = vmatpush1.msra.mxu0 0.0
      %416 = vmatprep.subr.mxu0 0.0
      %417 = vmatpush1.msra.mxu0 0.0
      %418 = vmatprep.subr.mxu0 0.0
      %419 = vmatpush1.msra.mxu0 0.0
      %420 = vmatprep.subr.mxu0 0.0
      %421 = vmatpush1.msra.mxu0 0.0
      %422 = vmatprep.subr.mxu0 0.0
      %423 = vmatpush1.msra.mxu0 0.0
      %424 = vmatprep.subr.mxu0 0.0
      %425 = vmatpush1.msra.mxu0 0.0
      %426 = vmatprep.subr.mxu0 0.0
      %427 = vmatpush1.msra.mxu0 0.0
      %428 = vmatprep.subr.mxu0 0.0
      %429 = vmatpush1.msra.mxu0 0.0
      %430 = vmatprep.subr.mxu0 0.0
      %431 = vmatpush1.msra.mxu0 0.0
      %432 = vmatprep.subr.mxu0 0.0
      %433 = vmatpush1.msra.mxu0 0.0
      %434 = vmatprep.subr.mxu0 0.0
      %435 = vmatpush1.msra.mxu0 0.0
      %436 = vmatprep.subr.mxu0 0.0
      %437 = vmatpush1.msra.mxu0 0.0
      %438 = vmatprep.subr.mxu0 0.0
      %439 = vmatpush1.msra.mxu0 0.0
      %440 = vmatprep.subr.mxu0 0.0
      %441 = vmatpush1.msra.mxu0 0.0
      %442 = vmatprep.subr.mxu0 0.0
      %443 = vmatpush1.msra.mxu0 0.0
      %444 = vmatprep.subr.mxu0 0.0
      %445 = vmatpush1.msra.mxu0 0.0
      %446 = vmatprep.subr.mxu0 0.0
      %447 = vmatpush1.msra.mxu0 0.0
      %448 = vmatprep.subr.mxu0 0.0
      %449 = vmatpush1.msra.mxu0 0.0
      %450 = vmatprep.subr.mxu0 0.0
      %451 = vmatpush1.msra.mxu0 0.0
      %452 = vmatprep.subr.mxu0 0.0
      %453 = vmatpush1.msra.mxu0 0.0
      %454 = vmatprep.subr.mxu0 0.0
      %455 = vmatpush1.msra.mxu0 0.0
      %456 = vmatprep.mubr.f32.mxu0 0.0
      %457 = vmatmul.mubr.f32.gmra.mrb[0].mxu0 %v390
      %v458 = vpop.f32.mrb[0].mxu0
      %v459 = vadd.f32 0.0, %v458
      %v460 = vpop.f32.mrb[0].mxu0
      %461 = vdwg.mxu0
      %v463 = vunpack.c.l.s4 1934713408
      %v464 = vunpack.c.0.s8 %v463
      %v465 = vlaneseq
      %v466 = vshrl.u32 %v465, 7
      %v467 = vsub.s32 %v464, %v466
      %v468 = vrot.slane %v459, %v467
      %v469 = vcombine.high %v468, 0.0
      %471 = vrot.lane.b32.xlu0 %v469, 64
      %v472 = vpop.permute.xlu0 %471
      %v474 = vsel %vm299, %v468, %v472
      %475 = vst [vmem:[%s204] sm:$0x1] %v474
      %p476 = scmp.lt.s32.totalorder %s15, 1
      %s477 = scalar_select %p476, %s15, 1
      %s478 = scalar_lea.vmem %s4, %s477
      // Predicated region
      $region37: #{co_attention.1} parent=35 // pred_check
        %p479 = pneg %p127
      $region38: #{co_attention.1} parent=35 // pred_check_branch
        %481 = sbr.rel (%p479) target = $region40
      $region39: #{co_attention.1} parent=35 // pred_region
        _
      $region40: #{co_attention.1} parent=35 // pred_fallthru
        _
    $region36: #{co_attention.1} parent=5 // pred_fallthru
      _
    %p482 = scmp.le.s32.totalorder 2, %s10
    // Predicated region
    $region41: #{co_attention.1} parent=5 // pred_check
      %p483 = pneg %p482
    $region42: #{co_attention.1} parent=5 // pred_check_branch
      %485 = sbr.rel (%p483) target = $region44
    $region43: #{co_attention.1} parent=5 // pred_region
      %s486 = ssub.s32 %s10, 2
      // Predicated region
      $region45: #{co_attention.1} parent=43 // pred_check
        %p487 = pneg %p133
      $region46: #{co_attention.1} parent=43 // pred_check_branch
        %489 = sbr.rel (%p487) target = $region48
      $region47: #{co_attention.1} parent=43 // pred_region
        %p490 = scmp.lt.s32.totalorder %s16, 1
        %s491 = scalar_select %p490, %s16, 1
        %s492 = scalar_lea.vmem %s4, %s491
      $region48: #{co_attention.1} parent=43 // pred_fallthru
        _
    $region44: #{co_attention.1} parent=5 // pred_fallthru
      _
  $region6: #{co_attention.1} parent=0 // loop_footer
    %s14 = sadd.s32 1, %s10
  $region7: #{co_attention.1} parent=0 // loop_footer_branch
    %9 = sbr.rel target = $region3
  $region8: #{co_attention.1} parent=0 // loop_exit
    _

</llo_original>
